<compile_context>
chip_gen: v5e
topology: v5e:2x2
jax: 0.10.0
libtpu: 0.0.40
codegen_flags: <defaults>
</compile_context>

<pallas_src>
import math
import functools

import jax
import jax.numpy as jnp
from jax import lax
from jax.experimental import pallas as pl
from jax.experimental.pallas import tpu as pltpu


_SQRT_HALF = 1.0 / math.sqrt(2.0)
_GELU_TANH_C = math.sqrt(2.0 / math.pi)


def _ffn_kernel(x_ref, w1_ref, b1_ref, w2_ref, b2_ref, o_ref, acc_ref, *,
                approx_gelu):
    # x_ref:  (tm, d_model)      w1_ref: (d_model, tf)   b1_ref: (1, tf)  f32
    # w2_ref: (tf, d_model)      b2_ref: (1, d_model)    f32
    # o_ref:  (tm, d_model)      acc_ref: (tm, d_model)  f32 scratch
    j = pl.program_id(1)

    @pl.when(j == 0)
    def _init():
        # Seed the accumulator with b2 so the epilogue is just a cast + store.
        acc_ref[...] = jnp.broadcast_to(
            b2_ref[...].astype(jnp.float32), acc_ref.shape)

    # Linear 1 (partial over d_ff): native-dtype operands, f32 accumulate on MXU.
    h = jnp.dot(x_ref[...], w1_ref[...], preferred_element_type=jnp.float32)
    h = h + b1_ref[...].astype(jnp.float32)

    if approx_gelu:
        # tanh-approximate GELU: tanh runs on the EUP slot instead of a long
        # VPU polynomial; use when the kernel is not MXU/DMA-bound.
        h = 0.5 * h * (1.0 + jnp.tanh(_GELU_TANH_C * (h + 0.044715 * h * h * h)))
    else:
        # Exact (erf-based) GELU matching torch's default F.gelu. NOTE: erf is
        # NOT EUP-native; it expands to a VPU polynomial.
        h = 0.5 * h * (1.0 + lax.erf(h * _SQRT_HALF))

    # TODO(synk): dropout is treated as identity (inference / p=0); a training
    # version would draw a mask via pltpu.prng_seed + pltpu.prng_random_bits.

    # Linear 2 (partial over d_ff): accumulate into the resident f32 scratch.
    acc_ref[...] += jnp.dot(h.astype(w2_ref.dtype), w2_ref[...],
                            preferred_element_type=jnp.float32)

    @pl.when(j == pl.num_programs(1) - 1)
    def _finalize():
        o_ref[...] = acc_ref[...].astype(o_ref.dtype)


def _round_up(a, b):
    return (a + b - 1) // b * b


def _cdiv(a, b):
    return (a + b - 1) // b


@functools.lru_cache(maxsize=1)
def _vmem_capacity_bytes():
    """Physical VMEM per TensorCore (128 MiB v5e/v6e, 64 MiB v7x)."""
    try:
        cap = getattr(pltpu.get_tpu_info(), "vmem_capacity_bytes", None)
        if cap:
            return int(cap)
    except Exception:
        pass
    return 64 * 1024 * 1024  # conservative fallback: v7x per-TC VMEM


def _sublane_granularity(dtype):
    # Sub-32-bit dtypes pack along sublanes: 8 rows (f32), 16 (bf16), 32 (int8).
    return {4: 8, 2: 16, 1: 32}.get(jnp.dtype(dtype).itemsize, 8)


def _tile_footprint_bytes(row_tile, ff_tile, d_model, op_itemsize, out_itemsize):
    dbl = 2  # BlockSpec double-buffers every streamed operand
    x_b = row_tile * d_model * op_itemsize * dbl
    w1_b = d_model * ff_tile * op_itemsize * dbl
    w2_b = ff_tile * d_model * op_itemsize * dbl
    b_b = (ff_tile + d_model) * 4 * dbl
    out_b = row_tile * d_model * out_itemsize * dbl
    acc_b = row_tile * d_model * 4
    return x_b + w1_b + w2_b + b_b + out_b + acc_b


def _select_tiles(n, d_model, d_ff, tm, tf, op_itemsize, out_itemsize, gran,
                  budget):
    row_tile = min(_round_up(tm, gran), _round_up(n, gran))
    ff_tile = d_ff if d_ff <= tf else tf

    # Every buffer scales with d_model, so shrink tf first, then tm, until the
    # (double-buffered) tile working set fits the VMEM budget.
    while _tile_footprint_bytes(row_tile, ff_tile, d_model,
                                op_itemsize, out_itemsize) > budget:
        if ff_tile >= 256:
            ff_tile = max(128, (ff_tile // 2) // 128 * 128)
        elif row_tile > 128 and row_tile >= 2 * gran:
            row_tile = max(128, _round_up(row_tile // 2, 128))
        elif row_tile > gran:
            row_tile = max(gran, _round_up(row_tile // 2, gran))
        else:
            break

    # Prefer >= 2 token tiles so the "parallel" axis can shard across the two
    # TensorCores on v7x (a single tile leaves half the chip idle).
    if _round_up(n, row_tile) // row_tile < 2 and row_tile >= 256:
        row_tile = max(128, _round_up(_cdiv(n, 2), 128))

    return row_tile, ff_tile


@functools.partial(jax.jit,
                   static_argnames=("tm", "tf", "approx_gelu", "bf16_matmul"))
def feed_forward_block(x, w1, b1, w2, b2, *, tm=512, tf=512,
                       approx_gelu=False, bf16_matmul=False):
    """Fused Linear -> GELU -> (dropout = identity) -> Linear.

    x: [batch, seq, d_model]; w1: [d_model, d_ff]; b1: [d_ff];
    w2: [d_ff, d_model]; b2: [d_model].

    tm: token (row) tile. Default 512; v6e benefits from 768-1024 if VMEM
        allows; do not drop below 256 even on v5e (weight re-streaming becomes
        the bottleneck). Auto-clamped / auto-shrunk to the VMEM budget.
    tf: d_ff reduction tile (multiple of 128); bounds resident weight VMEM and
        auto-shrinks for large d_model.
    approx_gelu: tanh-approximate GELU (EUP) instead of exact erf GELU (VPU).
    bf16_matmul: cast x/W1/W2 to bf16 for the MXU (f32 accumulate) — halves
        weight HBM traffic; output stays in the original dtype.
    """
    batch, seq, d_model = x.shape
    d_ff = w1.shape[1]
    n = batch * seq
    out_dtype = x.dtype

    if bf16_matmul and x.dtype == jnp.float32:
        x = x.astype(jnp.bfloat16)
        w1 = w1.astype(jnp.bfloat16)
        w2 = w2.astype(jnp.bfloat16)

    op_itemsize = x.dtype.itemsize
    gran = _sublane_granularity(x.dtype)

    vmem_cap = _vmem_capacity_bytes()
    # ~80% of physical VMEM, leaving headroom for compiler-internal scratch:
    # ~102 MiB on v5e/v6e (128 MiB physical), ~51 MiB on v7x (64 MiB physical).
    vmem_budget = int(min(vmem_cap * 0.8, vmem_cap - 8 * 1024 * 1024))

    row_tile, ff_tile = _select_tiles(n, d_model, d_ff, tm, tf, op_itemsize,
                                      jnp.dtype(out_dtype).itemsize, gran,
                                      vmem_budget)

    n_pad = _round_up(n, row_tile)
    d_ff_pad = _round_up(d_ff, ff_tile)

    x2d = x.reshape(n, d_model)
    if n_pad != n:
        x2d = jnp.pad(x2d, ((0, n_pad - n), (0, 0)))

    w1p, b1p, w2p = w1, b1, w2
    if d_ff_pad != d_ff:
        # Zero padding is exact: gelu(0) = 0 and the padded W2 rows are zero.
        w1p = jnp.pad(w1, ((0, 0), (0, d_ff_pad - d_ff)))
        b1p = jnp.pad(b1, ((0, d_ff_pad - d_ff),))
        w2p = jnp.pad(w2, ((0, d_ff_pad - d_ff), (0, 0)))

    # Biases stay f32 (tiny) and are applied in f32 inside the kernel.
    b1_2d = b1p.reshape(1, d_ff_pad).astype(jnp.float32)
    b2_2d = b2.reshape(1, d_model).astype(jnp.float32)

    grid = (n_pad // row_tile, d_ff_pad // ff_tile)

    cost = pl.CostEstimate(
        flops=4 * n * d_model * d_ff,                       # two matmuls
        transcendentals=n * d_ff,                           # gelu
        bytes_accessed=(
            n_pad * d_model * (op_itemsize + jnp.dtype(out_dtype).itemsize)
            # Weight slabs are re-streamed once per token tile.
            + grid[0] * (w1p.size + w2p.size) * op_itemsize
            + (b1_2d.size + b2_2d.size) * 4),
    )

    kernel = functools.partial(_ffn_kernel, approx_gelu=approx_gelu)

    out2d = pl.pallas_call(
        kernel,
        out_shape=jax.ShapeDtypeStruct((n_pad, d_model), out_dtype),
        grid_spec=pltpu.PrefetchScalarGridSpec(
            num_scalar_prefetch=0,
            grid=grid,
            in_specs=[
                pl.BlockSpec((row_tile, d_model), lambda i, j: (i, 0)),   # x tile
                pl.BlockSpec((d_model, ff_tile), lambda i, j: (0, j)),    # W1 slab
                pl.BlockSpec((1, ff_tile), lambda i, j: (0, j)),          # b1 slice
                pl.BlockSpec((ff_tile, d_model), lambda i, j: (j, 0)),    # W2 slab
                pl.BlockSpec((1, d_model), lambda i, j: (0, 0)),          # b2
            ],
            out_specs=pl.BlockSpec((row_tile, d_model), lambda i, j: (i, 0)),
            scratch_shapes=[pltpu.VMEM((row_tile, d_model), jnp.float32)],
        ),
        compiler_params=pltpu.CompilerParams(
            dimension_semantics=("parallel", "arbitrary"),
            vmem_limit_bytes=vmem_budget,
        ),
        cost_estimate=cost,
    )(x2d, w1p, b1_2d, w2p, b2_2d)

    return out2d[:n].reshape(batch, seq, d_model)


def _reference(x, w1, b1, w2, b2):
    h = jnp.einsum("bsd,df->bsf", x, w1) + b1
    h = 0.5 * h * (1.0 + lax.erf(h / jnp.sqrt(2.0)))
    return jnp.einsum("bsf,fd->bsd", h, w2) + b2


def _make_params(key, d_model, d_ff):
    k1, k2, k3, k4 = jax.random.split(key, 4)
    lim1 = 1.0 / math.sqrt(d_model)
    lim2 = 1.0 / math.sqrt(d_ff)
    w1 = jax.random.uniform(k1, (d_model, d_ff), jnp.float32, -lim1, lim1)
    b1 = jax.random.uniform(k2, (d_ff,), jnp.float32, -lim1, lim1)
    w2 = jax.random.uniform(k3, (d_ff, d_model), jnp.float32, -lim2, lim2)
    b2 = jax.random.uniform(k4, (d_ff if False else d_model,), jnp.float32, -lim2, lim2)
    return w1, b1, w2, b2


if __name__ == "__main__":
    key = jax.random.PRNGKey(0)
    k_small, k_big = jax.random.split(key, 2)

    # --- Small shapes consistent with the module's forward (single grid step).
    batch, seq, d_model, d_ff = 2, 8, 32, 64
    kx, kp = jax.random.split(k_small, 2)
    x = jax.random.normal(kx, (batch, seq, d_model), dtype=jnp.float32)
    w1, b1, w2, b2 = _make_params(kp, d_model, d_ff)

    ref = _reference(x, w1, b1, w2, b2)

    out = jax.block_until_ready(feed_forward_block(x, w1, b1, w2, b2))
    assert out.shape == (batch, seq, d_model)
    assert jnp.allclose(out, ref, atol=1e-4, rtol=1e-4), "mismatch (small, exact)"

    # Same small case through the tanh-approximate GELU path (EUP tanh).
    out_a = jax.block_until_ready(
        feed_forward_block(x, w1, b1, w2, b2, approx_gelu=True))
    assert jnp.allclose(out_a, ref, atol=2e-2, rtol=2e-2), "mismatch (approx gelu)"

    # --- Exercises row padding + multi-step token/d_ff tiling and the
    #     accumulator init(b2)/finalize path.
    batch2, seq2, d_model2, d_ff2 = 2, 136, 128, 256   # n=272 -> padded to 384
    kx2, kp2 = jax.random.split(k_big, 2)
    x2 = jax.random.normal(kx2, (batch2, seq2, d_model2), dtype=jnp.float32)
    w1b, b1b, w2b, b2b = _make_params(kp2, d_model2, d_ff2)

    ref2 = _reference(x2, w1b, b1b, w2b, b2b)

    out2 = jax.block_until_ready(
        feed_forward_block(x2, w1b, b1b, w2b, b2b, tm=128, tf=128))
    assert out2.shape == (batch2, seq2, d_model2)
    assert jnp.allclose(out2, ref2, atol=5e-4, rtol=5e-4), "mismatch (tiled, exact)"

    # --- Default tiles + bf16 matmul operands (exercises the >=2 token-tile
    #     split and the reduced-HBM-traffic path); looser tolerance for bf16.
    out3 = jax.block_until_ready(
        feed_forward_block(x2, w1b, b1b, w2b, b2b, bf16_matmul=True))
    assert out3.shape == (batch2, seq2, d_model2)
    assert jnp.allclose(out3, ref2, atol=3e-2, rtol=3e-2), "mismatch (bf16 path)"

    print("KERNEL_OK")
</pallas_src>

<mosaic_0001>
module attributes {stable_mosaic.version = 11 : i64} {
  func.func @_ffn_kernel(%arg0: i32, %arg1: i32, %arg2: memref<16x32xf32, #tpu.memory_space<vmem>>, %arg3: memref<32x64xf32, #tpu.memory_space<vmem>>, %arg4: memref<1x64xf32, #tpu.memory_space<vmem>>, %arg5: memref<64x32xf32, #tpu.memory_space<vmem>>, %arg6: memref<1x32xf32, #tpu.memory_space<vmem>>, %arg7: memref<16x32xf32, #tpu.memory_space<vmem>>, %arg8: memref<16x32xf32, #tpu.memory_space<vmem>>) attributes {dimension_semantics = [#tpu.dimension_semantics<parallel>, #tpu.dimension_semantics<arbitrary>], iteration_bounds = array<i64: 1, 1>, scalar_prefetch = 0 : i64, scratch_operands = 1 : i64, tpu.core_type = #tpu.core_type<tc>, window_params = [{transform_indices = @transform_0, window_bounds = array<i64: 16, 32>}, {transform_indices = @transform_1, window_bounds = array<i64: 32, 64>}, {transform_indices = @transform_2, window_bounds = array<i64: 1, 64>}, {transform_indices = @transform_3, window_bounds = array<i64: 64, 32>}, {pipeline_mode = #tpu.pipeline_mode<synchronous>, transform_indices = @transform_4, window_bounds = array<i64: 1, 32>}, {transform_indices = @transform_5, window_bounds = array<i64: 16, 32>}]} {
    %c0_i32 = arith.constant 0 : i32
    %0 = arith.cmpi eq, %arg1, %c0_i32 : i32
    %1 = arith.extui %0 : i1 to i32
    %c0_i32_0 = arith.constant 0 : i32
    %2 = arith.cmpi ne, %1, %c0_i32_0 : i32
    scf.if %2 {
      %c0_18 = arith.constant 0 : index
      %c0_19 = arith.constant 0 : index
      %25 = vector.load %arg6[%c0_18, %c0_19] : memref<1x32xf32, #tpu.memory_space<vmem>>, vector<1x32xf32>
      %26 = vector.shape_cast %25 : vector<1x32xf32> to vector<1x32xf32>
      %27 = vector.broadcast %26 : vector<1x32xf32> to vector<16x32xf32>
      %c0_20 = arith.constant 0 : index
      %c0_21 = arith.constant 0 : index
      %28 = vector.load %arg8[%c0_20, %c0_21] : memref<16x32xf32, #tpu.memory_space<vmem>>, vector<16x32xf32>
      tpu.vector_store %arg8[%c0_20, %c0_21], %27 {strides = array<i32>} : memref<16x32xf32, #tpu.memory_space<vmem>>, vector<16x32xf32>,
    } else {
    }
    %c0 = arith.constant 0 : index
    %c0_1 = arith.constant 0 : index
    %3 = vector.load %arg2[%c0, %c0_1] : memref<16x32xf32, #tpu.memory_space<vmem>>, vector<16x32xf32>
    %c0_2 = arith.constant 0 : index
    %c0_3 = arith.constant 0 : index
    %4 = vector.load %arg3[%c0_2, %c0_3] : memref<32x64xf32, #tpu.memory_space<vmem>>, vector<32x64xf32>
    %cst = arith.constant dense<0.000000e+00> : vector<16x64xf32>
    %5 = tpu.matmul %3, %4, %cst {dimension_numbers = #tpu.dot_dimension_numbers<[1], [0], [0], [1], [0, 0, 1, 1], [], []>} : vector<16x32xf32>, vector<32x64xf32>, vector<16x64xf32> -> vector<16x64xf32>
    %c0_4 = arith.constant 0 : index
    %c0_5 = arith.constant 0 : index
    %6 = vector.load %arg4[%c0_4, %c0_5] : memref<1x64xf32, #tpu.memory_space<vmem>>, vector<1x64xf32>
    %7 = vector.broadcast %6 : vector<1x64xf32> to vector<16x64xf32>
    %8 = arith.addf %5, %7 : vector<16x64xf32>
    %cst_6 = arith.constant 5.000000e-01 : f32
    %9 = vector.broadcast %cst_6 : f32 to vector<16x64xf32>
    %10 = arith.mulf %9, %8 : vector<16x64xf32>
    %cst_7 = arith.constant 0.707106769 : f32
    %11 = vector.broadcast %cst_7 : f32 to vector<16x64xf32>
    %12 = arith.mulf %8, %11 : vector<16x64xf32>
    %13 = math.erf %12 : vector<16x64xf32>
    %cst_8 = arith.constant 1.000000e+00 : f32
    %14 = vector.broadcast %cst_8 : f32 to vector<16x64xf32>
    %15 = arith.addf %14, %13 : vector<16x64xf32>
    %16 = arith.mulf %10, %15 : vector<16x64xf32>
    %c0_9 = arith.constant 0 : index
    %c0_10 = arith.constant 0 : index
    %17 = vector.load %arg8[%c0_9, %c0_10] : memref<16x32xf32, #tpu.memory_space<vmem>>, vector<16x32xf32>
    %c0_11 = arith.constant 0 : index
    %c0_12 = arith.constant 0 : index
    %18 = vector.load %arg5[%c0_11, %c0_12] : memref<64x32xf32, #tpu.memory_space<vmem>>, vector<64x32xf32>
    %cst_13 = arith.constant dense<0.000000e+00> : vector<16x32xf32>
    %19 = tpu.matmul %16, %18, %cst_13 {dimension_numbers = #tpu.dot_dimension_numbers<[1], [0], [0], [1], [0, 0, 1, 1], [], []>} : vector<16x64xf32>, vector<64x32xf32>, vector<16x32xf32> -> vector<16x32xf32>
    %20 = arith.addf %17, %19 : vector<16x32xf32>
    %c0_14 = arith.constant 0 : index
    %c0_15 = arith.constant 0 : index
    %21 = vector.load %arg8[%c0_14, %c0_15] : memref<16x32xf32, #tpu.memory_space<vmem>>, vector<16x32xf32>
    tpu.vector_store %arg8[%c0_14, %c0_15], %20 {strides = array<i32>} : memref<16x32xf32, #tpu.memory_space<vmem>>, vector<16x32xf32>,
    %c0_i32_16 = arith.constant 0 : i32
    %22 = arith.cmpi eq, %arg1, %c0_i32_16 : i32
    %23 = arith.extui %22 : i1 to i32
    %c0_i32_17 = arith.constant 0 : i32
    %24 = arith.cmpi ne, %23, %c0_i32_17 : i32
    scf.if %24 {
      %c0_18 = arith.constant 0 : index
      %c0_19 = arith.constant 0 : index
      %25 = vector.load %arg8[%c0_18, %c0_19] : memref<16x32xf32, #tpu.memory_space<vmem>>, vector<16x32xf32>
      %c0_20 = arith.constant 0 : index
      %c0_21 = arith.constant 0 : index
      %26 = vector.load %arg7[%c0_20, %c0_21] : memref<16x32xf32, #tpu.memory_space<vmem>>, vector<16x32xf32>
      tpu.vector_store %arg7[%c0_20, %c0_21], %25 {strides = array<i32>} : memref<16x32xf32, #tpu.memory_space<vmem>>, vector<16x32xf32>,
    } else {
    }
    return
  }
  func.func @transform_0(%arg0: i32, %arg1: i32) -> (i32, i32) {
    %c0_i32 = arith.constant 0 : i32
    %c0_i32_0 = arith.constant 0 : i32
    return %arg0, %c0_i32 : i32, i32
  }
  func.func @transform_1(%arg0: i32, %arg1: i32) -> (i32, i32) {
    %c0_i32 = arith.constant 0 : i32
    %c0_i32_0 = arith.constant 0 : i32
    return %c0_i32, %arg1 : i32, i32
  }
  func.func @transform_2(%arg0: i32, %arg1: i32) -> (i32, i32) {
    %c0_i32 = arith.constant 0 : i32
    %c0_i32_0 = arith.constant 0 : i32
    return %c0_i32, %arg1 : i32, i32
  }
  func.func @transform_3(%arg0: i32, %arg1: i32) -> (i32, i32) {
    %c0_i32 = arith.constant 0 : i32
    %c0_i32_0 = arith.constant 0 : i32
    return %arg1, %c0_i32 : i32, i32
  }
  func.func @transform_4(%arg0: i32, %arg1: i32) -> (i32, i32) {
    %c0_i32 = arith.constant 0 : i32
    %c0_i32_0 = arith.constant 0 : i32
    %c0_i32_1 = arith.constant 0 : i32
    return %c0_i32, %c0_i32_0 : i32, i32
  }
  func.func @transform_5(%arg0: i32, %arg1: i32) -> (i32, i32) {
    %c0_i32 = arith.constant 0 : i32
    %c0_i32_0 = arith.constant 0 : i32
    return %arg0, %c0_i32 : i32, i32
  }
}

</mosaic_0001>

<llo_original>
// kernel: feed_forward_block.1
$region0: #{feed_forward_block.1}
  #allocation0 [shape = 'u32[]', space=smem, size = 0x4, offset = 0x4, fixed_abs, tag = 'smem constant byte address 0x4 - core index']
  #allocation1 [shape = 'u32[72,128]{1,0:T(1,128)}', space=vmem, size = 0x9000, scoped, tag = 'internal scratch']
  #allocation2 [shape = 'f32[16,32]{1,0:T(8,128)}', space=vmem, size = 0x2000, scoped, tag = 'scratch operand']
  %s0 = inlined_call_operand.vmem [shape: f32[16,32], index: 0, kind: input, shape index: {}]
  %s1 = inlined_call_operand.vmem [shape: f32[32,64], index: 1, kind: input, shape index: {}]
  %s2 = inlined_call_operand.vmem [shape: f32[1,64], index: 2, kind: input, shape index: {}]
  %s3 = inlined_call_operand.vmem [shape: f32[64,32], index: 3, kind: input, shape index: {}]
  %s4 = inlined_call_operand.vmem [shape: f32[1,32], index: 4, kind: input, shape index: {}]
  %s5 = inlined_call_operand.hbm [shape: f32[16,32], index: 5, kind: output, shape index: {}]
  %s6 = sld [smem:[#allocation0]]
  $region38: #{feed_forward_block.1} parent=0
    _
  %s8 = ssub.s32 1, %s6
  %s9 = scalar_select 0, %s8, %s6
  $region1: #{feed_forward_block.1} parent=0
    #allocation3 [shape = 'u8[8192]{0}', space=vmem, size = 0x2000, scoped, tag = 'output window, operand 0, single buffered']
    #allocation4 [shape = 's32[1]{0}', space=sflag, size = 0x4, scoped, tag = 'scoped memory for feed_forward_block.1']
    %10 = vsyncpa [#allocation4], 0
    // Predicated region
    $region2: #{feed_forward_block.1} parent=1 // pred_check
      _
    $region3: #{feed_forward_block.1} parent=1 // pred_check_branch
      %12 = sbr.rel (0) target = $region5
    $region4: #{feed_forward_block.1} parent=1 // pred_region
      _
    $region5: #{feed_forward_block.1} parent=1 // pred_fallthru
      _
    // Predicated region
    $region6: #{feed_forward_block.1} parent=1 // pred_check
      _
    $region7: #{feed_forward_block.1} parent=1 // pred_check_branch
      %14 = sbr.rel (0) target = $region9
    $region8: #{feed_forward_block.1} parent=1 // pred_region
      _
    $region9: #{feed_forward_block.1} parent=1 // pred_fallthru
      _
    // Predicated region
    $region10: #{feed_forward_block.1} parent=1 // pred_check
      _
    $region11: #{feed_forward_block.1} parent=1 // pred_check_branch
      %16 = sbr.rel (0) target = $region13
    $region12: #{feed_forward_block.1} parent=1 // pred_region
      _
    $region13: #{feed_forward_block.1} parent=1 // pred_fallthru
      _
    // Predicated region
    $region14: #{feed_forward_block.1} parent=1 // pred_check
      _
    $region15: #{feed_forward_block.1} parent=1 // pred_check_branch
      %18 = sbr.rel (0) target = $region17
    $region16: #{feed_forward_block.1} parent=1 // pred_region
      _
    $region17: #{feed_forward_block.1} parent=1 // pred_fallthru
      _
    // Predicated region
    $region18: #{feed_forward_block.1} parent=1 // pred_check
      _
    $region19: #{feed_forward_block.1} parent=1 // pred_check_branch
      %20 = sbr.rel (0) target = $region21
    $region20: #{feed_forward_block.1} parent=1 // pred_region
      _
    $region21: #{feed_forward_block.1} parent=1 // pred_fallthru
      _
    %p21 = scmp.eq.s32.totalorder 0, 0
    // Predicated region
    $region22: #{feed_forward_block.1} parent=1 // pred_check
      %p22 = pneg %p21
    $region23: #{feed_forward_block.1} parent=1 // pred_check_branch
      %24 = sbr.rel (%p22) target = $region25
    $region24: #{feed_forward_block.1} parent=1 // pred_region
      %v25 = vld [vmem:[%s4] sm:$0x1]
      %v27 = vperm.slane %v25, 0
      %vm29 = vcmask 261120
      %30 = vst.msk [vmem:[#allocation2] sm:$0xff] %vm29, %v27
      %31 = vst.msk [vmem:[#allocation2 + $0x8] sm:$0xff] %vm29, %v27
    $region25: #{feed_forward_block.1} parent=1 // pred_fallthru
      _
    %v32 = vld [vmem:[%s0] sm:$0xff]
    %v33 = vld [vmem:[%s0 + $0x8] sm:$0xff]
    %v34 = vld [vmem:[%s1] sm:$0xff]
    %v35 = vld [vmem:[%s1 + $0x8] sm:$0xff]
    %v36 = vld [vmem:[%s1 + $0x10] sm:$0xff]
    %v37 = vld [vmem:[%s1 + $0x18] sm:$0xff]
    %v38 = vld [vmem:[%s2] sm:$0x1]
    %v40 = vperm.slane %v38, 0
    %vm42 = vcmask 261120
    %v44 = vsel %vm42, %v32, 0
    %v47 = vsel %vm42, %v33, 0
    %49 = vmatpush.msra.mxu0 0.0
    %50 = vmatpush.msra.mxu0 0.0
    %51 = vmatpush.msra.mxu0 0.0
    %52 = vmatpush.msra.mxu0 0.0
    %53 = vmatpush.msra.mxu0 0.0
    %54 = vmatpush.msra.mxu0 0.0
    %55 = vmatpush.msra.mxu0 0.0
    %56 = vmatpush.msra.mxu0 0.0
    %57 = vmatpush.msra.mxu0 0.0
    %58 = vmatpush.msra.mxu0 0.0
    %59 = vmatpush.msra.mxu0 0.0
    %60 = vmatpush.msra.mxu0 0.0
    %61 = vmatpush.msra.mxu0 %v37
    %62 = vmatpush.msra.mxu0 %v36
    %63 = vmatpush.msra.mxu0 %v35
    %64 = vmatpush.msra.mxu0 %v34
    %65 = vmatmul.f32.gmra.mxu0 %v44
    %v66 = vpop.f32.mrf.mxu0
    %v67 = vadd.f32 %v40, %v66
    %68 = vmatmul.f32.gmra.mxu0 %v47
    %v69 = vpop.f32.mrf.mxu0
    %v70 = vadd.f32 %v40, %v69
    %71 = vdwg.mxu0
    %v72 = vmul.f32 %v67, 0.5
    %v73 = vmul.f32 %v70, 0.5
    %v74 = vmul.f32 %v67, 0.70710677
    %v75 = vmul.f32 %v70, 0.70710677
    %v76 = vmul.f32 %v74, %v74
    %v77 = vmin.f32 16.0, %v76
    %v78 = vmul.f32 %v77, 2.1237322e-06
    %v79 = vadd.f32 %v78, 0.00028619796
    %v80 = vmul.f32 %v77, %v79
    %v81 = vadd.f32 %v80, 0.0036580483
    %v82 = vmul.f32 %v77, %v81
    %v83 = vadd.f32 %v82, 0.05243302
    %v84 = vmul.f32 %v77, %v83
    %v85 = vadd.f32 %v84, 0.18741608
    %v86 = vmul.f32 %v77, %v85
    %v87 = vadd.f32 %v86, 1.1283791
    %v88 = vmul.f32 %v74, %v87
    %v89 = vmul.f32 %v77, 3.8918573e-05
    %v90 = vadd.f32 %v89, 0.001143296
    %v91 = vmul.f32 %v77, %v90
    %v92 = vadd.f32 %v91, 0.014752088
    %v93 = vmul.f32 %v77, %v92
    %v94 = vadd.f32 %v93, 0.112945676
    %v95 = vmul.f32 %v77, %v94
    %v96 = vadd.f32 %v95, 0.4994258
    %v97 = vmul.f32 %v77, %v96
    %v98 = vadd.f32 %v97, 1.0
    %v99 = vrcp.pop %v98
    %v100 = vmul.f32 %v98, %v99
    %v101 = vsub.f32 1.0, %v100
    %v102 = vmul.f32 %v99, %v101
    %v103 = vadd.f32 %v99, %v102
    %vm104 = vweird.f32 %v98
    %vm105 = vweird.f32 %v99
    %vm106 = vmor %vm104, %vm105
    %v107 = vsel %vm106, %v99, %v103
    %v108 = vand.u32 2147483647, %v98
    %vm109 = vcmp.eq.f32.partialorder %v108, 8.507059e+37
    %v110 = vand.u32 %v98, 2147483648
    %v111 = vor.u32 1.1754944e-38, %v110
    %v112 = vsel %vm109, %v111, %v107
    %v113 = vmul.f32 %v88, %v112
    %v114 = vmin.f32 %v113, 1.0
    %v115 = vmax.f32 %v114, -1.0
    %v116 = vmul.f32 %v75, %v75
    %v117 = vmin.f32 16.0, %v116
    %v118 = vmul.f32 %v117, 2.1237322e-06
    %v119 = vadd.f32 %v118, 0.00028619796
    %v120 = vmul.f32 %v117, %v119
    %v121 = vadd.f32 %v120, 0.0036580483
    %v122 = vmul.f32 %v117, %v121
    %v123 = vadd.f32 %v122, 0.05243302
    %v124 = vmul.f32 %v117, %v123
    %v125 = vadd.f32 %v124, 0.18741608
    %v126 = vmul.f32 %v117, %v125
    %v127 = vadd.f32 %v126, 1.1283791
    %v128 = vmul.f32 %v75, %v127
    %v129 = vmul.f32 %v117, 3.8918573e-05
    %v130 = vadd.f32 %v129, 0.001143296
    %v131 = vmul.f32 %v117, %v130
    %v132 = vadd.f32 %v131, 0.014752088
    %v133 = vmul.f32 %v117, %v132
    %v134 = vadd.f32 %v133, 0.112945676
    %v135 = vmul.f32 %v117, %v134
    %v136 = vadd.f32 %v135, 0.4994258
    %v137 = vmul.f32 %v117, %v136
    %v138 = vadd.f32 %v137, 1.0
    %v139 = vrcp.pop %v138
    %v140 = vmul.f32 %v138, %v139
    %v141 = vsub.f32 1.0, %v140
    %v142 = vmul.f32 %v139, %v141
    %v143 = vadd.f32 %v139, %v142
    %vm144 = vweird.f32 %v138
    %vm145 = vweird.f32 %v139
    %vm146 = vmor %vm144, %vm145
    %v147 = vsel %vm146, %v139, %v143
    %v148 = vand.u32 2147483647, %v138
    %vm149 = vcmp.eq.f32.partialorder %v148, 8.507059e+37
    %v150 = vand.u32 %v138, 2147483648
    %v151 = vor.u32 1.1754944e-38, %v150
    %v152 = vsel %vm149, %v151, %v147
    %v153 = vmul.f32 %v128, %v152
    %v154 = vmin.f32 %v153, 1.0
    %v155 = vmax.f32 %v154, -1.0
    %v156 = vadd.f32 %v115, 1.0
    %v157 = vadd.f32 %v155, 1.0
    %v158 = vmul.f32 %v72, %v156
    %v159 = vmul.f32 %v73, %v157
    %v160 = vld [vmem:[#allocation2] sm:$0xff]
    %v161 = vld [vmem:[#allocation2 + $0x8] sm:$0xff]
    %v162 = vld [vmem:[%s3] sm:$0xff]
    %v163 = vld [vmem:[%s3 + $0x8] sm:$0xff]
    %v164 = vld [vmem:[%s3 + $0x10] sm:$0xff]
    %v165 = vld [vmem:[%s3 + $0x18] sm:$0xff]
    %v166 = vld [vmem:[%s3 + $0x20] sm:$0xff]
    %v167 = vld [vmem:[%s3 + $0x28] sm:$0xff]
    %v168 = vld [vmem:[%s3 + $0x30] sm:$0xff]
    %v169 = vld [vmem:[%s3 + $0x38] sm:$0xff]
    %vm170 = vcmask 523264
    %v172 = vsel %vm170, %v158, 0
    %v175 = vsel %vm170, %v159, 0
    %177 = vmatpush.msra.mxu0 0.0
    %178 = vmatpush.msra.mxu0 0.0
    %179 = vmatpush.msra.mxu0 0.0
    %180 = vmatpush.msra.mxu0 0.0
    %181 = vmatpush.msra.mxu0 0.0
    %182 = vmatpush.msra.mxu0 0.0
    %183 = vmatpush.msra.mxu0 0.0
    %184 = vmatpush.msra.mxu0 0.0
    %185 = vmatpush.msra.mxu0 %v169
    %186 = vmatpush.msra.mxu0 %v168
    %187 = vmatpush.msra.mxu0 %v167
    %188 = vmatpush.msra.mxu0 %v166
    %189 = vmatpush.msra.mxu0 %v165
    %190 = vmatpush.msra.mxu0 %v164
    %191 = vmatpush.msra.mxu0 %v163
    %192 = vmatpush.msra.mxu0 %v162
    %193 = vmatmul.f32.gmra.mxu0 %v172
    %v194 = vpop.f32.mrf.mxu0
    %v195 = vadd.f32 0.0, %v194
    %196 = vmatmul.f32.gmra.mxu0 %v175
    %v197 = vpop.f32.mrf.mxu0
    %v198 = vadd.f32 0.0, %v197
    %199 = vdwg.mxu0
    %v200 = vadd.f32 %v160, %v195
    %v201 = vadd.f32 %v161, %v198
    %202 = vst.msk [vmem:[#allocation2] sm:$0xff] %vm42, %v200
    %203 = vst.msk [vmem:[#allocation2 + $0x8] sm:$0xff] %vm42, %v201
    // Predicated region
    $region26: #{feed_forward_block.1} parent=1 // pred_check
      %p204 = pneg %p21
    $region27: #{feed_forward_block.1} parent=1 // pred_check_branch
      %206 = sbr.rel (%p204) target = $region29
    $region28: #{feed_forward_block.1} parent=1 // pred_region
      %v207 = vld [vmem:[#allocation2] sm:$0xff]
      %v208 = vld [vmem:[#allocation2 + $0x8] sm:$0xff]
      %209 = vst.msk [vmem:[#allocation3] sm:$0xff] %vm42, %v207
      %210 = vst.msk [vmem:[#allocation3 + $0x8] sm:$0xff] %vm42, %v208
    $region29: #{feed_forward_block.1} parent=1 // pred_fallthru
      _
    // Predicated region
    $region30: #{feed_forward_block.1} parent=1 // pred_check
      _
    $region31: #{feed_forward_block.1} parent=1 // pred_check_branch
      %212 = sbr.rel (0) target = $region33
    $region32: #{feed_forward_block.1} parent=1 // pred_region
      %214 = vsyncadd [#allocation4], 0
      %s215 = sshll.u32 [#allocation3], 4
      %s216 = int_to_ptr.vmem [resolvable:$true] %s215
      %s217 = sshll.u32 %s5, 4
      %s218 = int_to_ptr.hbm [resolvable:$true] %s217
      %223 = dma.vmem_to_hbm [thread:$0]  %s216, 256, %s218, [#allocation4], 128, 128, 8
    $region33: #{feed_forward_block.1} parent=1 // pred_fallthru
      _
    // Predicated region
    $region34: #{feed_forward_block.1} parent=1 // pred_check
      _
    $region35: #{feed_forward_block.1} parent=1 // pred_check_branch
      %225 = sbr.rel (0) target = $region37
    $region36: #{feed_forward_block.1} parent=1 // pred_region
      %227 = dma.done [#allocation4], 256
    $region37: #{feed_forward_block.1} parent=1 // pred_fallthru
      _
    %228 = vsyncpa [#allocation4], 1

</llo_original>
